<compile_context>
chip_gen: v5e
topology: v5e:2x2
jax: 0.10.0
libtpu: 0.0.40
codegen_flags: <defaults>
</compile_context>

<pallas_src>
import math

import jax
import jax.numpy as jnp
from jax.experimental import pallas as pl
from jax.experimental.pallas import tpu as pltpu


def _round_up(x, m):
    return ((x + m - 1) // m) * m


# ---------------------------------------------------------------------------
# Kernels
# ---------------------------------------------------------------------------

def _linear_relu_kernel(x_ref, w_ref, b_ref, o_ref):
    # x_ref: (rows, K)  w_ref: (K, D)  b_ref: (1, D)  o_ref: (rows, D)
    y = jnp.dot(x_ref[...], w_ref[...], preferred_element_type=jnp.float32)
    o_ref[...] = jnp.maximum(y + b_ref[...], 0.0).astype(o_ref.dtype)


def _linear_relu_repeat_kernel(x_ref, w_ref, b_ref, o_ref):
    # x_ref: (M, K)  w_ref: (K, D)  b_ref: (1, D)  o_ref: (TP*M, D)
    #
    # Compute the (M, D) embedding once, then replicate it across TP patches
    # with a single lane/sublane-dense (TP*M, D) store.  Replication uses a
    # one-hot selection matmul (rows of S are one-hot -> values are exact and
    # the result lands directly in the dense output layout, no reshape of the
    # sublane dim needed).
    M = x_ref.shape[0]
    rows = o_ref.shape[0]
    y = jnp.dot(x_ref[...], w_ref[...], preferred_element_type=jnp.float32)
    y = jnp.maximum(y + b_ref[...], 0.0)
    r = jax.lax.broadcasted_iota(jnp.int32, (rows, M), 0)
    c = jax.lax.broadcasted_iota(jnp.int32, (rows, M), 1)
    sel = (r % M == c).astype(jnp.float32)           # (TP*M, M), one-hot rows
    o_ref[...] = jnp.dot(sel, y, preferred_element_type=jnp.float32).astype(o_ref.dtype)


# ---------------------------------------------------------------------------
# Wrappers
# ---------------------------------------------------------------------------

def _embed_rows(x2d, weight, b2d, *, out_dtype, tile_rows=8192):
    """Row-tiled, pipelined Linear+ReLU: (R, K) @ (K, D) -> (R, D)."""
    R, K = x2d.shape
    D = weight.shape[1]

    # Writeback-bound kernel: pick the biggest row tile that comfortably fits
    # VMEM.  8192 rows x 256 f32 = 8 MiB out tile; x + out double-buffered is
    # ~17 MiB, inside the explicit 32 MiB scoped limit on v5e/v6e/v7x.
    if R <= tile_rows:
        tm = R                                   # full-extent block
    else:
        tm = _round_up(tile_rows, 8)

    in_bytes = x2d.dtype.itemsize
    out_bytes = jnp.dtype(out_dtype).itemsize
    cost = pl.CostEstimate(
        flops=2 * R * K * D,
        transcendentals=0,
        bytes_accessed=in_bytes * (R * K + K * D + D) + out_bytes * R * D,
    )

    return pl.pallas_call(
        _linear_relu_kernel,
        out_shape=jax.ShapeDtypeStruct((R, D), out_dtype),
        grid=(pl.cdiv(R, tm),),
        in_specs=[
            pl.BlockSpec((tm, K), lambda i: (i, 0)),   # row tile (pipelined)
            pl.BlockSpec((K, D), lambda i: (0, 0)),    # constant -> DMA'd once
            pl.BlockSpec((1, D), lambda i: (0, 0)),    # constant -> DMA'd once
        ],
        out_specs=pl.BlockSpec((tm, D), lambda i: (i, 0)),
        compiler_params=pltpu.CompilerParams(
            dimension_semantics=("parallel",),         # shard row tiles across TCs
            vmem_limit_bytes=32 * 1024 * 1024,
        ),
        cost_estimate=cost,
    )(x2d, weight, b2d)


def _choose_patch_tile(P, M, D, out_itemsize, target_bytes=4 << 20):
    """Pick TP so the (TP*M, D) out tile is ~target_bytes and TP*M % 8 == 0."""
    rows_target = max(1, target_bytes // (D * out_itemsize))
    tp = max(1, rows_target // M)
    if tp >= P:
        return P                                   # full extent: no divisibility rule
    g = 8 // math.gcd(M, 8)                        # smallest TP with TP*M % 8 == 0
    tp = max(g, (tp // g) * g)
    return P if tp >= P else tp


def _embed_and_repeat(x3d, weight, b2d, num_patches, *, out_dtype, patch_tile=None):
    """(N, M, K) -> (N, P*M, D), the patch repeat written straight from VMEM.

    Grid (N, cdiv(P, TP)): each step computes the (M, D) embedding for batch n
    (x block index ignores the inner patch axis, so it is DMA'd once per n and
    stays resident) and writes a dense (TP*M, D) slab.  The only (N*P, M, D)
    HBM traffic is the mandatory output writeback, in large unmasked bursts.
    """
    N, M, K = x3d.shape
    D = weight.shape[1]
    P = num_patches
    out_itemsize = jnp.dtype(out_dtype).itemsize

    if patch_tile is None:
        tp = _choose_patch_tile(P, M, D, out_itemsize)
    else:
        tp = min(patch_tile, P)
        assert tp == P or (tp * M) % 8 == 0, "patch_tile*M must be a multiple of 8"

    in_bytes = x3d.dtype.itemsize
    cost = pl.CostEstimate(
        flops=2 * N * M * K * D + 2 * N * P * M * M * D,   # embed + one-hot repeat
        transcendentals=0,
        bytes_accessed=in_bytes * (N * M * K + K * D + D) + out_itemsize * N * P * M * D,
    )

    return pl.pallas_call(
        _linear_relu_repeat_kernel,
        out_shape=jax.ShapeDtypeStruct((N, P * M, D), out_dtype),
        grid=(N, pl.cdiv(P, tp)),
        in_specs=[
            pl.BlockSpec((None, M, K), lambda n, pi: (n, 0, 0)),  # kernel sees (M, K)
            pl.BlockSpec((K, D), lambda n, pi: (0, 0)),
            pl.BlockSpec((1, D), lambda n, pi: (0, 0)),
        ],
        out_specs=pl.BlockSpec((None, tp * M, D), lambda n, pi: (n, pi, 0)),
        compiler_params=pltpu.CompilerParams(
            dimension_semantics=("parallel", "arbitrary"),  # N TC-sharded; keep x reuse
            vmem_limit_bytes=32 * 1024 * 1024,
        ),
        cost_estimate=cost,
    )(x3d, weight, b2d)


def camera_embedder_forward(cam_matrix, weight, bias, num_patches=None,
                            out_dtype=None, patch_tile=None):
    """cam_matrix: (N, M, K).  weight: (K, D).  bias: (D,).

    Returns (N, M, D) if num_patches is None, else (N * num_patches, M, D).
    Set out_dtype=jnp.bfloat16 to halve output HBM traffic (the kernel is
    writeback-bound) if the consumer accepts it; accumulation stays f32.
    """
    N, M, K = cam_matrix.shape
    D = weight.shape[1]
    out_dtype = cam_matrix.dtype if out_dtype is None else out_dtype
    b2d = bias.reshape(1, D)

    if num_patches is None:
        out2d = _embed_rows(cam_matrix.reshape(N * M, K), weight, b2d,
                            out_dtype=out_dtype)
        return out2d.reshape(N, M, D)

    out3d = _embed_and_repeat(cam_matrix, weight, b2d, num_patches,
                              out_dtype=out_dtype, patch_tile=patch_tile)
    # (N, P*M, D) -> (N*P, M, D): contiguous, zero-copy, same row order as
    # unsqueeze(1).repeat(1, P, 1, 1) + rearrange('b t f d -> (b t) f d').
    return out3d.reshape(N * num_patches, M, D)


def _init_linear_params(key, in_dim, out_dim):
    # Deterministic init mimicking nn.Linear: U(-1/sqrt(fan_in), 1/sqrt(fan_in))
    kw, kb = jax.random.split(key)
    bound = 1.0 / math.sqrt(in_dim)
    weight = jax.random.uniform(kw, (in_dim, out_dim), jnp.float32, -bound, bound)
    bias = jax.random.uniform(kb, (out_dim,), jnp.float32, -bound, bound)
    return weight, bias


if __name__ == "__main__":
    extrinsics_dim = 12
    embed_dim = 256
    N, M = 2, 4

    key = jax.random.PRNGKey(0)
    k_in, k_params = jax.random.split(key)

    cam_matrix = jax.random.normal(k_in, (N, M, extrinsics_dim), jnp.float32)
    weight, bias = _init_linear_params(k_params, extrinsics_dim, embed_dim)

    # Plain-JAX reference.
    ref3d = jnp.maximum(jnp.einsum("nmk,kd->nmd", cam_matrix, weight) + bias, 0.0)

    # Path 1: no patch repeat.
    out_plain = jax.block_until_ready(camera_embedder_forward(cam_matrix, weight, bias))
    assert out_plain.shape == (N, M, embed_dim), out_plain.shape
    assert jnp.allclose(out_plain, ref3d, atol=1e-5, rtol=1e-5)

    # Path 2: with num_patches (single patch block, TP == P).
    P = 3
    out = jax.block_until_ready(
        camera_embedder_forward(cam_matrix, weight, bias, num_patches=P))
    ref = jnp.broadcast_to(
        ref3d[:, None, :, :], (N, P, M, embed_dim)).reshape(N * P, M, embed_dim)
    assert out.shape == (N * P, M, embed_dim), out.shape
    assert jnp.allclose(out, ref, atol=1e-5, rtol=1e-5)

    # Path 3: with num_patches, exercising the blocked patch axis (TP < P).
    P2 = 8
    out2 = jax.block_until_ready(
        camera_embedder_forward(cam_matrix, weight, bias, num_patches=P2, patch_tile=2))
    ref2 = jnp.broadcast_to(
        ref3d[:, None, :, :], (N, P2, M, embed_dim)).reshape(N * P2, M, embed_dim)
    assert out2.shape == (N * P2, M, embed_dim), out2.shape
    assert jnp.allclose(out2, ref2, atol=1e-5, rtol=1e-5)

    print("KERNEL_OK")
</pallas_src>

<mosaic_0001>
module attributes {stable_mosaic.version = 11 : i64} {
  func.func @_linear_relu_kernel(%arg0: i32, %arg1: memref<8x12xf32, #tpu.memory_space<vmem>>, %arg2: memref<12x256xf32, #tpu.memory_space<vmem>>, %arg3: memref<1x256xf32, #tpu.memory_space<vmem>>, %arg4: memref<8x256xf32, #tpu.memory_space<vmem>>) attributes {dimension_semantics = [#tpu.dimension_semantics<parallel>], iteration_bounds = array<i64: 1>, scalar_prefetch = 0 : i64, scratch_operands = 0 : i64, tpu.core_type = #tpu.core_type<tc>, window_params = [{transform_indices = @transform_0, window_bounds = array<i64: 8, 12>}, {pipeline_mode = #tpu.pipeline_mode<synchronous>, transform_indices = @transform_1, window_bounds = array<i64: 12, 256>}, {pipeline_mode = #tpu.pipeline_mode<synchronous>, transform_indices = @transform_2, window_bounds = array<i64: 1, 256>}, {transform_indices = @transform_3, window_bounds = array<i64: 8, 256>}]} {
    %c0 = arith.constant 0 : index
    %c0_0 = arith.constant 0 : index
    %0 = vector.load %arg1[%c0, %c0_0] : memref<8x12xf32, #tpu.memory_space<vmem>>, vector<8x12xf32>
    %c0_1 = arith.constant 0 : index
    %c0_2 = arith.constant 0 : index
    %1 = vector.load %arg2[%c0_1, %c0_2] : memref<12x256xf32, #tpu.memory_space<vmem>>, vector<12x256xf32>
    %cst = arith.constant dense<0.000000e+00> : vector<8x256xf32>
    %2 = tpu.matmul %0, %1, %cst {dimension_numbers = #tpu.dot_dimension_numbers<[1], [0], [0], [1], [0, 0, 1, 1], [], []>} : vector<8x12xf32>, vector<12x256xf32>, vector<8x256xf32> -> vector<8x256xf32>
    %c0_3 = arith.constant 0 : index
    %c0_4 = arith.constant 0 : index
    %3 = vector.load %arg3[%c0_3, %c0_4] : memref<1x256xf32, #tpu.memory_space<vmem>>, vector<1x256xf32>
    %4 = vector.broadcast %3 : vector<1x256xf32> to vector<8x256xf32>
    %5 = arith.addf %2, %4 : vector<8x256xf32>
    %cst_5 = arith.constant 0.000000e+00 : f32
    %6 = vector.broadcast %cst_5 : f32 to vector<8x256xf32>
    %7 = arith.maximumf %5, %6 : vector<8x256xf32>
    %c0_6 = arith.constant 0 : index
    %c0_7 = arith.constant 0 : index
    %8 = vector.load %arg4[%c0_6, %c0_7] : memref<8x256xf32, #tpu.memory_space<vmem>>, vector<8x256xf32>
    tpu.vector_store %arg4[%c0_6, %c0_7], %7 {strides = array<i32>} : memref<8x256xf32, #tpu.memory_space<vmem>>, vector<8x256xf32>,
    return
  }
  func.func @transform_0(%arg0: i32) -> (i32, i32) {
    %c0_i32 = arith.constant 0 : i32
    %c0_i32_0 = arith.constant 0 : i32
    return %arg0, %c0_i32 : i32, i32
  }
  func.func @transform_1(%arg0: i32) -> (i32, i32) {
    %c0_i32 = arith.constant 0 : i32
    %c0_i32_0 = arith.constant 0 : i32
    %c0_i32_1 = arith.constant 0 : i32
    return %c0_i32, %c0_i32_0 : i32, i32
  }
  func.func @transform_2(%arg0: i32) -> (i32, i32) {
    %c0_i32 = arith.constant 0 : i32
    %c0_i32_0 = arith.constant 0 : i32
    %c0_i32_1 = arith.constant 0 : i32
    return %c0_i32, %c0_i32_0 : i32, i32
  }
  func.func @transform_3(%arg0: i32) -> (i32, i32) {
    %c0_i32 = arith.constant 0 : i32
    %c0_i32_0 = arith.constant 0 : i32
    return %arg0, %c0_i32 : i32, i32
  }
}

</mosaic_0001>

<llo_original>
// kernel: tpu_custom_call.1
$region0: #{tpu_custom_call.1}
  #allocation0 [shape = 'u32[]', space=smem, size = 0x4, offset = 0x4, fixed_abs, tag = 'smem constant byte address 0x4 - core index']
  #allocation1 [shape = 'u32[72,128]{1,0:T(1,128)}', space=vmem, size = 0x9000, scoped, tag = 'internal scratch']
  %s0 = inlined_call_operand.hbm [shape: f32[8,12], index: 0, kind: input, shape index: {}]
  %s1 = inlined_call_operand.hbm [shape: f32[12,256], index: 1, kind: input, shape index: {}]
  %s2 = inlined_call_operand.hbm [shape: f32[1,256], index: 2, kind: input, shape index: {}]
  %s3 = inlined_call_operand.hbm [shape: f32[8,256], index: 3, kind: output, shape index: {}]
  %s4 = sld [smem:[#allocation0]]
  $region34: #{tpu_custom_call.1} parent=0
    _
  %s6 = ssub.s32 1, %s4
  %s7 = scalar_select 0, %s6, %s4
  $region1: #{tpu_custom_call.1} parent=0
    #allocation2 [shape = 'u8[4096]{0}', space=vmem, size = 0x1000, scoped, tag = 'input window, operand 0, single buffered']
    #allocation3 [shape = 's32[1]{0}', space=sflag, size = 0x4, scoped, tag = 'scoped memory for tpu_custom_call.1']
    #allocation4 [shape = 's32[1]{0}', space=sflag, size = 0x4, scoped, tag = 'scoped memory for tpu_custom_call.1']
    #allocation5 [shape = 'u8[16384]{0}', space=vmem, size = 0x4000, scoped, tag = 'input window, operand 1, single buffered']
    #allocation6 [shape = 's32[1]{0}', space=sflag, size = 0x4, scoped, tag = 'scoped memory for tpu_custom_call.1']
    #allocation7 [shape = 'u8[1024]{0}', space=vmem, size = 0x400, scoped, tag = 'input window, operand 2, single buffered']
    #allocation8 [shape = 'u8[8192]{0}', space=vmem, size = 0x2000, scoped, tag = 'output window, operand 0, single buffered']
    %8 = vsyncpa [#allocation3], 0
    %9 = vsyncpa [#allocation6], 0
    %10 = vsyncpa [#allocation4], 0
    // Predicated region
    $region2: #{tpu_custom_call.1} parent=1 // pred_check
      _
    $region3: #{tpu_custom_call.1} parent=1 // pred_check_branch
      %12 = sbr.rel (0) target = $region5
    $region4: #{tpu_custom_call.1} parent=1 // pred_region
      %14 = vsyncadd [#allocation3], 0
      %s16 = sshll.u32 %s0, 4
      %s17 = int_to_ptr.hbm [resolvable:$true] %s16
      %s18 = sshll.u32 [#allocation2], 4
      %s19 = int_to_ptr.vmem [resolvable:$true] %s18
      %21 = dma.hbm_to_vmem [thread:$0]  %s17, 128, %s19, [#allocation3]
    $region5: #{tpu_custom_call.1} parent=1 // pred_fallthru
      _
    // Predicated region
    $region6: #{tpu_custom_call.1} parent=1 // pred_check
      _
    $region7: #{tpu_custom_call.1} parent=1 // pred_check_branch
      %23 = sbr.rel (0) target = $region9
    $region8: #{tpu_custom_call.1} parent=1 // pred_region
      %25 = vsyncadd [#allocation6], 0
      %s26 = sshll.u32 %s1, 4
      %s27 = int_to_ptr.hbm [resolvable:$true] %s26
      %s28 = sshll.u32 [#allocation5], 4
      %s29 = int_to_ptr.vmem [resolvable:$true] %s28
      %34 = dma.hbm_to_vmem [thread:$0]  %s27, 512, %s29, [#allocation6], 256, 256, 16
    $region9: #{tpu_custom_call.1} parent=1 // pred_fallthru
      _
    // Predicated region
    $region10: #{tpu_custom_call.1} parent=1 // pred_check
      _
    $region11: #{tpu_custom_call.1} parent=1 // pred_check_branch
      %36 = sbr.rel (0) target = $region13
    $region12: #{tpu_custom_call.1} parent=1 // pred_region
      %38 = vsyncadd [#allocation6], 0
      %s40 = sshll.u32 %s2, 4
      %s41 = int_to_ptr.hbm [resolvable:$true] %s40
      %s42 = sshll.u32 [#allocation7], 4
      %s43 = int_to_ptr.vmem [resolvable:$true] %s42
      %45 = dma.hbm_to_vmem [thread:$0]  %s41, 32, %s43, [#allocation6]
    $region13: #{tpu_custom_call.1} parent=1 // pred_fallthru
      _
    // Predicated region
    $region14: #{tpu_custom_call.1} parent=1 // pred_check
      _
    $region15: #{tpu_custom_call.1} parent=1 // pred_check_branch
      %47 = sbr.rel (0) target = $region17
    $region16: #{tpu_custom_call.1} parent=1 // pred_region
      %49 = dma.done [#allocation3], 128
    $region17: #{tpu_custom_call.1} parent=1 // pred_fallthru
      _
    // Predicated region
    $region18: #{tpu_custom_call.1} parent=1 // pred_check
      _
    $region19: #{tpu_custom_call.1} parent=1 // pred_check_branch
      %51 = sbr.rel (0) target = $region21
    $region20: #{tpu_custom_call.1} parent=1 // pred_region
      %53 = dma.done [#allocation6], 512
    $region21: #{tpu_custom_call.1} parent=1 // pred_fallthru
      _
    // Predicated region
    $region22: #{tpu_custom_call.1} parent=1 // pred_check
      _
    $region23: #{tpu_custom_call.1} parent=1 // pred_check_branch
      %55 = sbr.rel (0) target = $region25
    $region24: #{tpu_custom_call.1} parent=1 // pred_region
      %57 = dma.done [#allocation6], 32
    $region25: #{tpu_custom_call.1} parent=1 // pred_fallthru
      _
    %v58 = vld [vmem:[#allocation2] sm:$0xff]
    %v59 = vld [vmem:[#allocation5] sm:$0xff]
    %v60 = vld [vmem:[#allocation5 + $0x8] sm:$0xff]
    %v61 = vld [vmem:[#allocation5 + $0x10] sm:$0xf]
    %v62 = vld [vmem:[#allocation5 + $0x18] sm:$0xf]
    %v63 = vld [vmem:[#allocation7] sm:$0x3]
    %v65 = vperm.slane %v63, 0
    %v66 = vperm.slane %v63, 1
    %vm69 = vcmask 97280
    %v71 = vsel %vm69, %v58, 0
    %vm73 = vcmask 1043456
    %v75 = vsel %vm73, %v61, 0
    %v78 = vsel %vm73, %v62, 0
    %80 = vmatpush.msra.mxu0 0.0
    %81 = vmatpush.msra.mxu0 0.0
    %82 = vmatpush.msra.mxu0 0.0
    %83 = vmatpush.msra.mxu0 0.0
    %84 = vmatpush.msra.mxu0 0.0
    %85 = vmatpush.msra.mxu0 0.0
    %86 = vmatpush.msra.mxu0 0.0
    %87 = vmatpush.msra.mxu0 0.0
    %88 = vmatpush.msra.mxu0 0.0
    %89 = vmatpush.msra.mxu0 0.0
    %90 = vmatpush.msra.mxu0 0.0
    %91 = vmatpush.msra.mxu0 0.0
    %92 = vmatpush.msra.mxu0 0.0
    %93 = vmatpush.msra.mxu0 0.0
    %94 = vmatpush.msra.mxu0 %v75
    %95 = vmatpush.msra.mxu0 %v59
    %96 = vmatmul.f32.gmra.mxu0 %v71
    %v97 = vpop.f32.mrf.mxu0
    %v98 = vadd.f32 %v65, %v97
    %99 = vdwg.mxu0
    %100 = vmatpush.msra.mxu0 0.0
    %101 = vmatpush.msra.mxu0 0.0
    %102 = vmatpush.msra.mxu0 0.0
    %103 = vmatpush.msra.mxu0 0.0
    %104 = vmatpush.msra.mxu0 0.0
    %105 = vmatpush.msra.mxu0 0.0
    %106 = vmatpush.msra.mxu0 0.0
    %107 = vmatpush.msra.mxu0 0.0
    %108 = vmatpush.msra.mxu0 0.0
    %109 = vmatpush.msra.mxu0 0.0
    %110 = vmatpush.msra.mxu0 0.0
    %111 = vmatpush.msra.mxu0 0.0
    %112 = vmatpush.msra.mxu0 0.0
    %113 = vmatpush.msra.mxu0 0.0
    %114 = vmatpush.msra.mxu0 %v78
    %115 = vmatpush.msra.mxu0 %v60
    %116 = vmatmul.f32.gmra.mxu0 %v71
    %v117 = vpop.f32.mrf.mxu0
    %v118 = vadd.f32 %v66, %v117
    %119 = vdwg.mxu0
    %v120 = vmax.f32 %v98, 0.0
    %v121 = vmax.f32 %v118, 0.0
    %122 = vst [vmem:[#allocation8] sm:$0xff] %v120
    %123 = vst [vmem:[#allocation8 + $0x8] sm:$0xff] %v121
    // Predicated region
    $region26: #{tpu_custom_call.1} parent=1 // pred_check
      _
    $region27: #{tpu_custom_call.1} parent=1 // pred_check_branch
      %125 = sbr.rel (0) target = $region29
    $region28: #{tpu_custom_call.1} parent=1 // pred_region
      %127 = vsyncadd [#allocation4], 0
      %s129 = sshll.u32 [#allocation8], 4
      %s130 = int_to_ptr.vmem [resolvable:$true] %s129
      %s131 = sshll.u32 %s3, 4
      %s132 = int_to_ptr.hbm [resolvable:$true] %s131
      %134 = dma.vmem_to_hbm [thread:$0]  %s130, 256, %s132, [#allocation4]
    $region29: #{tpu_custom_call.1} parent=1 // pred_fallthru
      _
    // Predicated region
    $region30: #{tpu_custom_call.1} parent=1 // pred_check
      _
    $region31: #{tpu_custom_call.1} parent=1 // pred_check_branch
      %136 = sbr.rel (0) target = $region33
    $region32: #{tpu_custom_call.1} parent=1 // pred_region
      %138 = dma.done [#allocation4], 256
    $region33: #{tpu_custom_call.1} parent=1 // pred_fallthru
      _
    %139 = vsyncpa [#allocation3], 1
    %140 = vsyncpa [#allocation6], 1
    %141 = vsyncpa [#allocation4], 1

</llo_original>
